<compile_context>
chip_gen: v7x
topology: tpu7x:2x2x1
jax: 0.10.0
libtpu: 0.0.40
codegen_flags: <defaults>
</compile_context>

<pallas_src>
import math

import jax
import jax.numpy as jnp
from jax.experimental import pallas as pl
from jax.experimental.pallas import tpu as pltpu

_LANE = 128
_MIB = 1024 * 1024


def _round_up(x, m):
    return ((x + m - 1) // m) * m


def _vmem_budget_bytes():
    # v5e / v6e: 128 MiB physical VMEM -> 96 MiB scoped budget.
    # v7x: 64 MiB physical -> 40 MiB.  Fall back to the v7x-safe number.
    try:
        cap = pltpu.get_tpu_info().vmem_capacity_bytes
    except Exception:
        cap = 64 * _MIB
    return 96 * _MIB if cap >= 128 * _MIB else 40 * _MIB


def _pick_batch_tile(n, max_n_tile):
    """Pick (tile_n, n_pad): tile_n multiple of 8 (sublane-aligned x rows AND out
    rows), minimal batch padding, and >= 2 batch tiles when N >= 16 so the
    'parallel' axis can be split across v7x's two TensorCores."""
    cap = min(max_n_tile, n)
    if n >= 16:
        cap = min(cap, max(8, n // 2))
    best_t, best_pad = None, None
    t = (cap // 8) * 8
    while t >= 8:
        pad = _round_up(n, t) - n
        if best_pad is None or pad < best_pad or (pad == best_pad and t > best_t):
            best_t, best_pad = t, pad
        t -= 8
    if best_t is None:
        return n, n                      # tiny batch: one full-extent block
    return best_t, n + best_pad


def _pick_hw_tile(hw, rows_tile, x_itemsize, budget_bytes, max_hw_tile):
    """Largest lane tile (multiple of 128) whose double-buffered x block fits the
    budget; prefer an exact divisor of hw (no padding copy, contiguous HBM runs
    >= ~1 KiB), else zero-pad hw (harmless for a sum-pool)."""
    max_hw = budget_bytes // (2 * rows_tile * x_itemsize)
    max_hw = max(_LANE, (max_hw // _LANE) * _LANE)
    if max_hw_tile is not None:
        max_hw = min(max_hw, max(_LANE, (max_hw_tile // _LANE) * _LANE))
    max_hw = min(max_hw, _round_up(hw, _LANE))
    lo = min(512, max_hw)
    tile = None
    t = max_hw
    while t >= lo:
        if hw % t == 0:
            tile = t
            break
        t -= _LANE
    if tile is None:
        tile = max_hw
    return tile, _round_up(hw, tile)


def _make_kernel(num_ch, tile_n, tile_hw, group=8):
    nchunks = tile_hw // _LANE

    def kernel(x_ref, wenc_ref, wcls_ref, bcls_ref, out_ref, pool_acc):
        # x_ref    : (tile_n*num_ch, tile_hw) bf16   image rows (n-major, c-minor)
        # wenc_ref : (num_ch, feat_dim) f32          frozen encoder proj, 1/(H*W) folded in
        # wcls_ref : (feat_dim, nc_pad) f32          classifier weight.T, lane-padded to 128
        # bcls_ref : (1, nc_pad) f32                 classifier bias, lane-padded
        # out_ref  : (tile_n, nc_pad)                logits (resident across the HW axis)
        # pool_acc : (tile_n*num_ch, 128) f32        per-row lane-chunk partial sums
        k = pl.program_id(1)

        @pl.when(k == 0)
        def _init():
            pool_acc[...] = jnp.zeros_like(pool_acc)

        # Streaming phase: dense, aligned 128-lane VPU chunk adds only (no XLU
        # cross-lane reduce per step); bf16 -> f32 upcast keeps accumulation in f32.
        j = 0
        while j < nchunks:
            g = min(group, nchunks - j)
            part = x_ref[:, pl.ds(j * _LANE, _LANE)].astype(jnp.float32)
            for jj in range(1, g):
                part = part + x_ref[:, pl.ds((j + jj) * _LANE, _LANE)].astype(jnp.float32)
            pool_acc[...] = pool_acc[...] + part
            j += g

        @pl.when(k == pl.num_programs(1) - 1)
        def _finalize():
            feat_dim = wenc_ref.shape[1]
            # Frozen-encoder stand-in: GAP (scale pre-folded) -> linear -> ReLU.
            # The C-contraction (K = 3/4) is a VPU broadcast FMA, not an MXU matmul.
            feats = jnp.zeros((tile_n, feat_dim), dtype=jnp.float32)
            for c in range(num_ch):
                chan = pool_acc[pl.ds(c, tile_n, stride=num_ch), :]      # (tile_n, 128)
                pooled = jnp.sum(chan, axis=-1, keepdims=True)           # (tile_n, 1)
                feats = feats + pooled * wenc_ref[pl.ds(c, 1), :]        # (tile_n, feat_dim)
            feats = jnp.maximum(feats, 0.0)
            # Classifier: logits = feats @ W_cls.T + b (lane-dense padded output).
            logits = jnp.dot(feats, wcls_ref[...], preferred_element_type=jnp.float32)
            out_ref[...] = (logits + bcls_ref[...]).astype(out_ref.dtype)

    return kernel


def linear_classification_forward(x_nchw, w_enc, w_cls, b_cls, *,
                                  max_n_tile=64, max_hw_tile=None):
    """x_nchw: (N, C, H, W).  w_enc: (C, feat_dim) frozen encoder projection.
    w_cls: (num_classes, feat_dim).  b_cls: (num_classes,).
    Returns logits (N, num_classes) f32."""
    n, c, h, w = x_nchw.shape
    num_classes, feat_dim = w_cls.shape
    hw = h * w

    # Lane-dense padded classifier dim (avoid masked vst.msk partial stores).
    nc_pad = _round_up(max(num_classes, _LANE), _LANE)

    budget = _vmem_budget_bytes()
    tile_n, n_pad = _pick_batch_tile(n, max_n_tile)
    rows_tile = tile_n * c

    # VMEM residents besides the streamed x blocks (f32): weights, bias, double-
    # buffered output tile, pool scratch.  x rows are dense (no sublane padding).
    fixed = 4 * (c * feat_dim + feat_dim * nc_pad + nc_pad
                 + 2 * tile_n * nc_pad + rows_tile * _LANE)
    x_budget = max(budget - fixed - 4 * _MIB, 4 * _MIB)
    x_itemsize = 2                                            # x streamed as bf16
    tile_hw, hw_pad = _pick_hw_tile(hw, rows_tile, x_itemsize, x_budget, max_hw_tile)

    # (N, C, H, W) -> (N*C, HW): free reshape; a batch tile is then a dense,
    # sublane-aligned row slab.  Zero-pad rows/lanes only when alignment needs it
    # (zeros are harmless for a sum-pool; padded batch rows are sliced off below).
    x2d = x_nchw.reshape(n * c, hw)
    pad_rows = (n_pad - n) * c
    pad_lanes = hw_pad - hw
    if pad_rows or pad_lanes:
        x2d = jnp.pad(x2d, ((0, pad_rows), (0, pad_lanes)))
    if x2d.dtype != jnp.bfloat16:
        # TODO(synk): in a real pipeline x should arrive already in bf16 (the kernel
        # is HBM-bandwidth bound; this cast adds one extra wrapper pass otherwise).
        x2d = x2d.astype(jnp.bfloat16)

    # Fold the 1/(H*W) global-average-pool scale into the encoder projection.
    w_enc_scaled = w_enc.astype(jnp.float32) / float(hw)

    # Classifier weight.T / bias, zero-padded along the class (lane) axis.
    w_cls_t = jnp.zeros((feat_dim, nc_pad), jnp.float32).at[:, :num_classes].set(
        w_cls.astype(jnp.float32).T)
    b_cls_p = jnp.zeros((1, nc_pad), jnp.float32).at[:, :num_classes].set(
        b_cls.astype(jnp.float32))

    grid = (n_pad // tile_n, hw_pad // tile_hw)
    kernel = _make_kernel(c, tile_n, tile_hw)

    logits_pad = pl.pallas_call(
        kernel,
        out_shape=jax.ShapeDtypeStruct((n_pad, nc_pad), jnp.float32),
        grid=grid,
        in_specs=[
            pl.BlockSpec((rows_tile, tile_hw), lambda i, k: (i, k)),
            pl.BlockSpec((c, feat_dim), lambda i, k: (0, 0)),
            pl.BlockSpec((feat_dim, nc_pad), lambda i, k: (0, 0)),
            pl.BlockSpec((1, nc_pad), lambda i, k: (0, 0)),
        ],
        out_specs=pl.BlockSpec((tile_n, nc_pad), lambda i, k: (i, 0)),
        scratch_shapes=[pltpu.VMEM((rows_tile, _LANE), jnp.float32)],
        compiler_params=pltpu.CompilerParams(
            dimension_semantics=("parallel", "arbitrary"),
            vmem_limit_bytes=budget,
        ),
    )(x2d, w_enc_scaled, w_cls_t, b_cls_p)

    return logits_pad[:n, :num_classes]


if __name__ == "__main__":
    # Small shapes consistent with the forward pass.
    N, C, H, W = 2, 4, 16, 16
    FEAT_DIM = 32          # stand-in for encoder.inplanes (2048 for resnet50)
    NUM_CLASSES = 100

    key = jax.random.PRNGKey(0)
    k_x, k_enc, k_cls = jax.random.split(key, 3)

    x = jax.random.normal(k_x, (N, C, H, W), dtype=jnp.float32)

    # Frozen encoder stand-in weights (deterministic).
    w_enc = jax.random.normal(k_enc, (C, FEAT_DIM), dtype=jnp.float32) * 0.1

    # Classifier init mirrors PyTorch: weight ~ N(0, 0.01), bias = 0.
    w_cls = jax.random.normal(k_cls, (NUM_CLASSES, FEAT_DIM), dtype=jnp.float32) * 0.01
    b_cls = jnp.zeros((NUM_CLASSES,), dtype=jnp.float32)

    # max_hw_tile=128 is a TEST-ONLY override to force a 2-step HW reduction at these
    # toy shapes (exercises the accumulator / pipelined-grid path); the production
    # default derives the tile from the per-generation VMEM budget instead.
    logits = linear_classification_forward(x, w_enc, w_cls, b_cls, max_hw_tile=128)
    jax.block_until_ready(logits)

    # Pure-JAX reference of the same semantics (x streamed as bf16, f32 accumulation).
    x_bf = x.astype(jnp.bfloat16).astype(jnp.float32)
    pooled_ref = jnp.mean(x_bf.reshape(N, C, H * W), axis=-1)
    feats_ref = jnp.maximum(pooled_ref @ w_enc, 0.0)
    logits_ref = feats_ref @ w_cls.T + b_cls

    assert logits.shape == (N, NUM_CLASSES)
    assert jnp.allclose(logits, logits_ref, atol=1e-5, rtol=1e-4)

    print("KERNEL_OK")
</pallas_src>

<mosaic_0001>
module attributes {stable_mosaic.version = 11 : i64} {
  func.func @kernel(%arg0: i32, %arg1: i32, %arg2: memref<8x128xbf16, #tpu.memory_space<vmem>>, %arg3: memref<4x32xf32, #tpu.memory_space<vmem>>, %arg4: memref<32x128xf32, #tpu.memory_space<vmem>>, %arg5: memref<1x128xf32, #tpu.memory_space<vmem>>, %arg6: memref<2x128xf32, #tpu.memory_space<vmem>>, %arg7: memref<8x128xf32, #tpu.memory_space<vmem>>) attributes {dimension_semantics = [#tpu.dimension_semantics<parallel>, #tpu.dimension_semantics<arbitrary>], iteration_bounds = array<i64: 1, 2>, scalar_prefetch = 0 : i64, scratch_operands = 1 : i64, tpu.core_type = #tpu.core_type<tc>, window_params = [{transform_indices = @transform_0, window_bounds = array<i64: 8, 128>}, {pipeline_mode = #tpu.pipeline_mode<synchronous>, transform_indices = @transform_1, window_bounds = array<i64: 4, 32>}, {pipeline_mode = #tpu.pipeline_mode<synchronous>, transform_indices = @transform_2, window_bounds = array<i64: 32, 128>}, {pipeline_mode = #tpu.pipeline_mode<synchronous>, transform_indices = @transform_3, window_bounds = array<i64: 1, 128>}, {transform_indices = @transform_4, window_bounds = array<i64: 2, 128>}]} {
    %c0_i32 = arith.constant 0 : i32
    %0 = arith.cmpi eq, %arg1, %c0_i32 : i32
    %1 = arith.extui %0 : i1 to i32
    %c0_i32_0 = arith.constant 0 : i32
    %2 = arith.cmpi ne, %1, %c0_i32_0 : i32
    scf.if %2 {
      %cst = arith.constant 0.000000e+00 : f32
      %11 = vector.broadcast %cst : f32 to vector<8x128xf32>
      %c0_7 = arith.constant 0 : index
      %c0_8 = arith.constant 0 : index
      %12 = vector.load %arg7[%c0_7, %c0_8] : memref<8x128xf32, #tpu.memory_space<vmem>>, vector<8x128xf32>
      tpu.vector_store %arg7[%c0_7, %c0_8], %11 {strides = array<i32>} : memref<8x128xf32, #tpu.memory_space<vmem>>, vector<8x128xf32>,
    } else {
    }
    %c0 = arith.constant 0 : index
    %c0_1 = arith.constant 0 : index
    %3 = vector.load %arg2[%c0, %c0_1] : memref<8x128xbf16, #tpu.memory_space<vmem>>, vector<8x128xbf16>
    %4 = arith.extf %3 : vector<8x128xbf16> to vector<8x128xf32>
    %c0_2 = arith.constant 0 : index
    %c0_3 = arith.constant 0 : index
    %5 = vector.load %arg7[%c0_2, %c0_3] : memref<8x128xf32, #tpu.memory_space<vmem>>, vector<8x128xf32>
    %6 = arith.addf %5, %4 : vector<8x128xf32>
    %c0_4 = arith.constant 0 : index
    %c0_5 = arith.constant 0 : index
    %7 = vector.load %arg7[%c0_4, %c0_5] : memref<8x128xf32, #tpu.memory_space<vmem>>, vector<8x128xf32>
    tpu.vector_store %arg7[%c0_4, %c0_5], %6 {strides = array<i32>} : memref<8x128xf32, #tpu.memory_space<vmem>>, vector<8x128xf32>,
    %c1_i32 = arith.constant 1 : i32
    %8 = arith.cmpi eq, %arg1, %c1_i32 : i32
    %9 = arith.extui %8 : i1 to i32
    %c0_i32_6 = arith.constant 0 : i32
    %10 = arith.cmpi ne, %9, %c0_i32_6 : i32
    scf.if %10 {
      %cst = arith.constant 0.000000e+00 : f32
      %11 = vector.broadcast %cst : f32 to vector<2x32xf32>
      %c0_7 = arith.constant 0 : index
      %c0_8 = arith.constant 0 : index
      %12 = tpu.strided_load %arg7[%c0_7, %c0_8] {strides = array<i32: 4, 1>} : memref<8x128xf32, #tpu.memory_space<vmem>>, vector<2x128xf32>
      %cst_9 = arith.constant dense<0.000000e+00> : vector<2xf32>
      %13 = vector.multi_reduction <add>, %12, %cst_9 [1] : vector<2x128xf32> to vector<2xf32>
      %14 = vector.shape_cast %13 : vector<2xf32> to vector<2x1xf32>
      %c0_10 = arith.constant 0 : index
      %c0_11 = arith.constant 0 : index
      %15 = vector.load %arg3[%c0_10, %c0_11] : memref<4x32xf32, #tpu.memory_space<vmem>>, vector<1x32xf32>
      %16 = vector.broadcast %14 : vector<2x1xf32> to vector<2x32xf32>
      %17 = vector.broadcast %15 : vector<1x32xf32> to vector<2x32xf32>
      %18 = arith.mulf %16, %17 : vector<2x32xf32>
      %19 = arith.addf %11, %18 : vector<2x32xf32>
      %c1 = arith.constant 1 : index
      %c0_12 = arith.constant 0 : index
      %20 = tpu.strided_load %arg7[%c1, %c0_12] {strides = array<i32: 4, 1>} : memref<8x128xf32, #tpu.memory_space<vmem>>, vector<2x128xf32>
      %cst_13 = arith.constant dense<0.000000e+00> : vector<2xf32>
      %21 = vector.multi_reduction <add>, %20, %cst_13 [1] : vector<2x128xf32> to vector<2xf32>
      %22 = vector.shape_cast %21 : vector<2xf32> to vector<2x1xf32>
      %c1_14 = arith.constant 1 : index
      %c0_15 = arith.constant 0 : index
      %23 = vector.load %arg3[%c1_14, %c0_15] : memref<4x32xf32, #tpu.memory_space<vmem>>, vector<1x32xf32>
      %24 = vector.broadcast %22 : vector<2x1xf32> to vector<2x32xf32>
      %25 = vector.broadcast %23 : vector<1x32xf32> to vector<2x32xf32>
      %26 = arith.mulf %24, %25 : vector<2x32xf32>
      %27 = arith.addf %19, %26 : vector<2x32xf32>
      %c2 = arith.constant 2 : index
      %c0_16 = arith.constant 0 : index
      %28 = tpu.strided_load %arg7[%c2, %c0_16] {strides = array<i32: 4, 1>} : memref<8x128xf32, #tpu.memory_space<vmem>>, vector<2x128xf32>
      %cst_17 = arith.constant dense<0.000000e+00> : vector<2xf32>
      %29 = vector.multi_reduction <add>, %28, %cst_17 [1] : vector<2x128xf32> to vector<2xf32>
      %30 = vector.shape_cast %29 : vector<2xf32> to vector<2x1xf32>
      %c2_18 = arith.constant 2 : index
      %c0_19 = arith.constant 0 : index
      %31 = vector.load %arg3[%c2_18, %c0_19] : memref<4x32xf32, #tpu.memory_space<vmem>>, vector<1x32xf32>
      %32 = vector.broadcast %30 : vector<2x1xf32> to vector<2x32xf32>
      %33 = vector.broadcast %31 : vector<1x32xf32> to vector<2x32xf32>
      %34 = arith.mulf %32, %33 : vector<2x32xf32>
      %35 = arith.addf %27, %34 : vector<2x32xf32>
      %c3 = arith.constant 3 : index
      %c0_20 = arith.constant 0 : index
      %36 = tpu.strided_load %arg7[%c3, %c0_20] {strides = array<i32: 4, 1>} : memref<8x128xf32, #tpu.memory_space<vmem>>, vector<2x128xf32>
      %cst_21 = arith.constant dense<0.000000e+00> : vector<2xf32>
      %37 = vector.multi_reduction <add>, %36, %cst_21 [1] : vector<2x128xf32> to vector<2xf32>
      %38 = vector.shape_cast %37 : vector<2xf32> to vector<2x1xf32>
      %c3_22 = arith.constant 3 : index
      %c0_23 = arith.constant 0 : index
      %39 = vector.load %arg3[%c3_22, %c0_23] : memref<4x32xf32, #tpu.memory_space<vmem>>, vector<1x32xf32>
      %40 = vector.broadcast %38 : vector<2x1xf32> to vector<2x32xf32>
      %41 = vector.broadcast %39 : vector<1x32xf32> to vector<2x32xf32>
      %42 = arith.mulf %40, %41 : vector<2x32xf32>
      %43 = arith.addf %35, %42 : vector<2x32xf32>
      %cst_24 = arith.constant 0.000000e+00 : f32
      %44 = vector.broadcast %cst_24 : f32 to vector<2x32xf32>
      %45 = arith.maximumf %43, %44 : vector<2x32xf32>
      %c0_25 = arith.constant 0 : index
      %c0_26 = arith.constant 0 : index
      %46 = vector.load %arg4[%c0_25, %c0_26] : memref<32x128xf32, #tpu.memory_space<vmem>>, vector<32x128xf32>
      %cst_27 = arith.constant dense<0.000000e+00> : vector<2x128xf32>
      %47 = tpu.matmul %45, %46, %cst_27 {dimension_numbers = #tpu.dot_dimension_numbers<[1], [0], [0], [1], [0, 0, 1, 1], [], []>} : vector<2x32xf32>, vector<32x128xf32>, vector<2x128xf32> -> vector<2x128xf32>
      %c0_28 = arith.constant 0 : index
      %c0_29 = arith.constant 0 : index
      %48 = vector.load %arg5[%c0_28, %c0_29] : memref<1x128xf32, #tpu.memory_space<vmem>>, vector<1x128xf32>
      %49 = vector.broadcast %48 : vector<1x128xf32> to vector<2x128xf32>
      %50 = arith.addf %47, %49 : vector<2x128xf32>
      %c0_30 = arith.constant 0 : index
      %c0_31 = arith.constant 0 : index
      %51 = vector.load %arg6[%c0_30, %c0_31] : memref<2x128xf32, #tpu.memory_space<vmem>>, vector<2x128xf32>
      tpu.vector_store %arg6[%c0_30, %c0_31], %50 {strides = array<i32>} : memref<2x128xf32, #tpu.memory_space<vmem>>, vector<2x128xf32>,
    } else {
    }
    return
  }
  func.func @transform_0(%arg0: i32, %arg1: i32) -> (i32, i32) {
    %c0_i32 = arith.constant 0 : i32
    return %arg0, %arg1 : i32, i32
  }
  func.func @transform_1(%arg0: i32, %arg1: i32) -> (i32, i32) {
    %c0_i32 = arith.constant 0 : i32
    %c0_i32_0 = arith.constant 0 : i32
    %c0_i32_1 = arith.constant 0 : i32
    return %c0_i32, %c0_i32_0 : i32, i32
  }
  func.func @transform_2(%arg0: i32, %arg1: i32) -> (i32, i32) {
    %c0_i32 = arith.constant 0 : i32
    %c0_i32_0 = arith.constant 0 : i32
    %c0_i32_1 = arith.constant 0 : i32
    return %c0_i32, %c0_i32_0 : i32, i32
  }
  func.func @transform_3(%arg0: i32, %arg1: i32) -> (i32, i32) {
    %c0_i32 = arith.constant 0 : i32
    %c0_i32_0 = arith.constant 0 : i32
    %c0_i32_1 = arith.constant 0 : i32
    return %c0_i32, %c0_i32_0 : i32, i32
  }
  func.func @transform_4(%arg0: i32, %arg1: i32) -> (i32, i32) {
    %c0_i32 = arith.constant 0 : i32
    %c0_i32_0 = arith.constant 0 : i32
    return %arg0, %c0_i32 : i32, i32
  }
}

</mosaic_0001>

<llo_original>
// kernel: tpu_custom_call.1
$region0: #{tpu_custom_call.1}
  #allocation0 [shape = 'u32[]', space=smem, size = 0x4, offset = 0x4, fixed_abs, tag = 'smem constant byte address 0x4 - core index']
  #allocation1 [shape = 'u32[144,128]{1,0:T(1,128)}', space=vmem, size = 0x12000, scoped, tag = 'internal scratch']
  #allocation2 [shape = 'f32[8,128]{1,0:T(8,128)}', space=vmem, size = 0x1000, scoped, tag = 'scratch operand']
  %s0 = inlined_call_operand.hbm [shape: bf16[8,256], index: 0, kind: input, shape index: {}]
  %s1 = inlined_call_operand.hbm [shape: f32[4,32], index: 1, kind: input, shape index: {}]
  %s2 = inlined_call_operand.hbm [shape: f32[32,128], index: 2, kind: input, shape index: {}]
  %s3 = inlined_call_operand.vmem [shape: f32[1,128], index: 3, kind: input, shape index: {}]
  %s4 = inlined_call_operand.hbm [shape: f32[2,128], index: 4, kind: output, shape index: {}]
  %s5 = sld [smem:[#allocation0]]
  $region69: #{tpu_custom_call.1} parent=0
    _
  %s7 = ssub.s32 1, %s5
  %s8 = scalar_select 0, %s7, %s5
  $region1: #{tpu_custom_call.1} parent=0
    #allocation3 [shape = 'u8[4096]{0}', space=vmem, size = 0x1000, scoped, tag = 'input window, operand 0']
    #allocation4 [shape = 's32[2]{0}', space=sflag, size = 0x8, scoped, tag = 'scoped memory for tpu_custom_call.1']
    #allocation5 [shape = 's32[2]{0}', space=sflag, size = 0x8, scoped, tag = 'scoped memory for tpu_custom_call.1']
    #allocation6 [shape = 'u8[2048]{0}', space=vmem, size = 0x800, scoped, tag = 'input window, operand 1, single buffered']
    #allocation7 [shape = 's32[1]{0}', space=sflag, size = 0x4, scoped, tag = 'scoped memory for tpu_custom_call.1']
    #allocation8 [shape = 'u8[16384]{0}', space=vmem, size = 0x4000, scoped, tag = 'input window, operand 2, single buffered']
    #allocation9 [shape = 'u8[1024]{0}', space=vmem, size = 0x400, scoped, tag = 'output window, operand 0, single buffered']
    %9 = vsyncpa [#allocation4], 0
    %s10 = scalar_lea.sflag [#allocation4], 1
    %11 = vsyncpa %s10, 0
    %12 = vsyncpa [#allocation7], 0
    %13 = vsyncpa [#allocation5], 0
    loop: start=0, step=1, limit=4
    $region2: #{tpu_custom_call.1} parent=1 // loop_pre_header
      _
    $region3: #{tpu_custom_call.1} parent=1 // loop_header
      %s15 = sphi 0, %s19
      %p16 = scmp.ge.s32.totalorder %s15, 4
      %s22 = sphi 0, %s34
      %s23 = sphi 0, %s30
      %s24 = sphi 0, %s22
      %s25 = sphi 0, %s23
      %s26 = sphi 0, %s24
      %s27 = sphi 0, %s25
      %s39 = sphi 0, %s41
      %s42 = sphi 0, %s39
      %s43 = sphi 0, %s42
      %s59 = sphi 0, %s43
      %s63 = sphi 0, %s63
      %s65 = sphi 0, %s63
      %s66 = sphi 0, %s65
      %s80 = sphi 0, %s66
      %s84 = sphi 0, %s84
      %s86 = sphi 0, %s84
      %s87 = sphi 0, %s86
      %s101 = sphi 0, %s87
      %s105 = sphi 0, %s105
      %s107 = sphi 0, %s105
      %s108 = sphi 0, %s107
      %s122 = sphi 0, %s108
      %s128 = sphi 0, %s130
      %s131 = sphi 0, %s128
      %s132 = sphi 0, %s131
      %s148 = sphi 0, %s132
    $region4: #{tpu_custom_call.1} parent=1 // loop_header_branch
      %18 = sbr.rel (%p16) target = $region8
    $region5: #{tpu_custom_call.1} parent=1 // loop_body
      %s20 = ssub.s32 %s15, 1
      %s21 = ssub.s32 %s15, 2
      %s28 = sadd.s32 1, %s23
      %p29 = scmp.ge.s32.totalorder %s28, 2
      %s30 = scalar_select %p29, 0, %s28
      %s31 = sadd.s32 1, %s22
      %s32 = scalar_select %p29, %s31, %s22
      %p33 = scmp.ge.s32.totalorder %s32, 1
      %s34 = scalar_select %p33, 0, %s32
      %s35 = ssub.s32 %s22, %s34
      %s36 = ssub.s32 %s23, %s30
      %s37 = sor.u32 %s35, %s36
      %p38 = scmp.eq.s32.totalorder %s37, 0
      %s40 = sadd.s32 %s39, 1
      %s41 = scalar_select %p38, %s39, %s40
      %p44 = pneg %p38
      %p45 = scmp.eq.s32.totalorder %s15, 1
      %p46 = por %p44, %p45
      %p47 = scmp.ne.s32.totalorder %s39, %s42
      %p48 = scmp.eq.s32.totalorder %s15, 0
      %p49 = por %p47, %p48
      %p50 = scmp.ne.s32.totalorder %s39, %s42
      %p51 = scmp.eq.s32.totalorder %s20, 1
      %p52 = por %p50, %p51
      %p53 = scmp.ne.s32.totalorder %s42, %s43
      %p54 = scmp.eq.s32.totalorder %s20, 0
      %p55 = por %p53, %p54
      %p56 = scmp.ne.s32.totalorder %s42, %s43
      %p57 = scmp.eq.s32.totalorder %s21, 1
      %p58 = por %p56, %p57
      %p60 = scmp.ne.s32.totalorder %s43, %s59
      %p61 = scmp.eq.s32.totalorder %s21, 0
      %p62 = por %p60, %p61
      %s64 = sadd.s32 %s63, 1
      %p67 = scmp.eq.s32.totalorder %s15, 1
      %p68 = scmp.ne.s32.totalorder %s63, %s65
      %p69 = scmp.eq.s32.totalorder %s15, 0
      %p70 = por %p68, %p69
      %p71 = scmp.ne.s32.totalorder %s63, %s65
      %p72 = scmp.eq.s32.totalorder %s20, 1
      %p73 = por %p71, %p72
      %p74 = scmp.ne.s32.totalorder %s65, %s66
      %p75 = scmp.eq.s32.totalorder %s20, 0
      %p76 = por %p74, %p75
      %p77 = scmp.ne.s32.totalorder %s65, %s66
      %p78 = scmp.eq.s32.totalorder %s21, 1
      %p79 = por %p77, %p78
      %p81 = scmp.ne.s32.totalorder %s66, %s80
      %p82 = scmp.eq.s32.totalorder %s21, 0
      %p83 = por %p81, %p82
      %s85 = sadd.s32 %s84, 1
      %p88 = scmp.eq.s32.totalorder %s15, 1
      %p89 = scmp.ne.s32.totalorder %s84, %s86
      %p90 = scmp.eq.s32.totalorder %s15, 0
      %p91 = por %p89, %p90
      %p92 = scmp.ne.s32.totalorder %s84, %s86
      %p93 = scmp.eq.s32.totalorder %s20, 1
      %p94 = por %p92, %p93
      %p95 = scmp.ne.s32.totalorder %s86, %s87
      %p96 = scmp.eq.s32.totalorder %s20, 0
      %p97 = por %p95, %p96
      %p98 = scmp.ne.s32.totalorder %s86, %s87
      %p99 = scmp.eq.s32.totalorder %s21, 1
      %p100 = por %p98, %p99
      %p102 = scmp.ne.s32.totalorder %s87, %s101
      %p103 = scmp.eq.s32.totalorder %s21, 0
      %p104 = por %p102, %p103
      %s106 = sadd.s32 %s105, 1
      %p109 = scmp.eq.s32.totalorder %s15, 1
      %p110 = scmp.ne.s32.totalorder %s105, %s107
      %p111 = scmp.eq.s32.totalorder %s15, 0
      %p112 = por %p110, %p111
      %p113 = scmp.ne.s32.totalorder %s105, %s107
      %p114 = scmp.eq.s32.totalorder %s20, 1
      %p115 = por %p113, %p114
      %p116 = scmp.ne.s32.totalorder %s107, %s108
      %p117 = scmp.eq.s32.totalorder %s20, 0
      %p118 = por %p116, %p117
      %p119 = scmp.ne.s32.totalorder %s107, %s108
      %p120 = scmp.eq.s32.totalorder %s21, 1
      %p121 = por %p119, %p120
      %p123 = scmp.ne.s32.totalorder %s108, %s122
      %p124 = scmp.eq.s32.totalorder %s21, 0
      %p125 = por %p123, %p124
      %s126 = ssub.s32 %s22, %s34
      %p127 = scmp.eq.s32.totalorder %s126, 0
      %s129 = sadd.s32 %s128, 1
      %s130 = scalar_select %p127, %s128, %s129
      %p133 = pneg %p127
      %p134 = scmp.eq.s32.totalorder %s15, 1
      %p135 = por %p133, %p134
      %p136 = scmp.ne.s32.totalorder %s128, %s131
      %p137 = scmp.eq.s32.totalorder %s15, 0
      %p138 = por %p136, %p137
      %p139 = scmp.ne.s32.totalorder %s128, %s131
      %p140 = scmp.eq.s32.totalorder %s20, 1
      %p141 = por %p139, %p140
      %p142 = scmp.ne.s32.totalorder %s131, %s132
      %p143 = scmp.eq.s32.totalorder %s20, 0
      %p144 = por %p142, %p143
      %p145 = scmp.ne.s32.totalorder %s131, %s132
      %p146 = scmp.eq.s32.totalorder %s21, 1
      %p147 = por %p145, %p146
      %p149 = scmp.ne.s32.totalorder %s132, %s148
      %p150 = scmp.eq.s32.totalorder %s21, 0
      %p151 = por %p149, %p150
      %p152 = scmp.le.s32.totalorder 1, %s15
      %p153 = scmp.lt.s32.totalorder %s15, 3
      %p154 = pnand %p152, %p153
      %p155 = pneg %p154
      // Predicated region
      $region9: #{tpu_custom_call.1} parent=5 // pred_check
        _
      $region10: #{tpu_custom_call.1} parent=5 // pred_check_branch
        %157 = sbr.rel (%p154) target = $region12
      $region11: #{tpu_custom_call.1} parent=5 // pred_region
        %s158 = ssub.s32 %s15, 1
        // Predicated region
        $region13: #{tpu_custom_call.1} parent=11 // pred_check
          %p159 = pneg %p76
        $region14: #{tpu_custom_call.1} parent=11 // pred_check_branch
          %161 = sbr.rel (%p159) target = $region16
        $region15: #{tpu_custom_call.1} parent=11 // pred_region
          %s163 = ssub.s32 64, 64
          %164 = vsyncadd [#allocation7], %s163
          %s166 = sshll.u32 [#allocation6], 4
          %s167 = int_to_ptr.vmem [resolvable:$true] %s166
          %169 = dma.hbm_to_vmem [thread:$0]  %s1, 64, %s167, [#allocation7]
        $region16: #{tpu_custom_call.1} parent=11 // pred_fallthru
          _
        // Predicated region
        $region17: #{tpu_custom_call.1} parent=11 // pred_check
          %p170 = pneg %p97
        $region18: #{tpu_custom_call.1} parent=11 // pred_check_branch
          %172 = sbr.rel (%p170) target = $region20
        $region19: #{tpu_custom_call.1} parent=11 // pred_region
          %s174 = ssub.s32 512, 512
          %175 = vsyncadd [#allocation7], %s174
          %s176 = sshll.u32 [#allocation8], 4
          %s177 = int_to_ptr.vmem [resolvable:$true] %s176
          %182 = dma.hbm_to_vmem [thread:$0]  %s2, 512, %s177, [#allocation7], 128, 128, 8
        $region20: #{tpu_custom_call.1} parent=11 // pred_fallthru
          _
        // Predicated region
        $region21: #{tpu_custom_call.1} parent=11 // pred_check
          %p183 = pneg %p118
        $region22: #{tpu_custom_call.1} parent=11 // pred_check_branch
          %185 = sbr.rel (%p183) target = $region24
        $region23: #{tpu_custom_call.1} parent=11 // pred_region
          _
        $region24: #{tpu_custom_call.1} parent=11 // pred_fallthru
          _
      $region12: #{tpu_custom_call.1} parent=5 // pred_fallthru
        _
      %p186 = scmp.lt.s32.totalorder %s15, 2
      // Predicated region
      $region25: #{tpu_custom_call.1} parent=5 // pred_check
        %p187 = pneg %p186
      $region26: #{tpu_custom_call.1} parent=5 // pred_check_branch
        %189 = sbr.rel (%p187) target = $region28
      $region27: #{tpu_custom_call.1} parent=5 // pred_region
        // Predicated region
        $region29: #{tpu_custom_call.1} parent=27 // pred_check
          %p190 = pneg %p49
        $region30: #{tpu_custom_call.1} parent=27 // pred_check_branch
          %192 = sbr.rel (%p190) target = $region32
        $region31: #{tpu_custom_call.1} parent=27 // pred_region
          %s193 = sand.u32 %s39, 1
          %s194 = scalar_lea.sflag [#allocation4], %s193
          %s195 = sand.u32 %s39, 1
          %s196 = smul.addr %s195, 4
          %s197 = scalar_lea.vmem [#allocation3], %s196
          %s199 = ssub.s32 64, 64
          %200 = vsyncadd %s194, %s199
          %s201 = smul.addr %s22, 2
          %s202 = sadd.s32 %s23, %s201
          %s203 = smul.addr %s202, 64
          %s204 = scalar_lea.hbm %s0, %s203
          %s206 = sshll.u32 %s197, 4
          %s207 = int_to_ptr.vmem [resolvable:$true] %s206
          %209 = dma.hbm_to_vmem [thread:$0]  %s204, 64, %s207, %s194
        $region32: #{tpu_custom_call.1} parent=27 // pred_fallthru
          _
      $region28: #{tpu_custom_call.1} parent=5 // pred_fallthru
        _
      %p210 = scmp.le.s32.totalorder 1, %s15
      %p211 = scmp.lt.s32.totalorder %s15, 3
      %p212 = pnand %p210, %p211
      %p213 = pneg %p212
      // Predicated region
      $region33: #{tpu_custom_call.1} parent=5 // pred_check
        _
      $region34: #{tpu_custom_call.1} parent=5 // pred_check_branch
        %215 = sbr.rel (%p212) target = $region36
      $region35: #{tpu_custom_call.1} parent=5 // pred_region
        %s216 = ssub.s32 %s15, 1
        %s217 = sand.u32 %s42, 1
        %s218 = scalar_lea.sflag [#allocation4], %s217
        %s219 = sand.u32 %s42, 1
        %s220 = smul.addr %s219, 4
        %s221 = scalar_lea.vmem [#allocation3], %s220
        // Predicated region
        $region37: #{tpu_custom_call.1} parent=35 // pred_check
          %p222 = pneg %p55
        $region38: #{tpu_custom_call.1} parent=35 // pred_check_branch
          %224 = sbr.rel (%p222) target = $region40
        $region39: #{tpu_custom_call.1} parent=35 // pred_region
          %225 = dma.done %s218, 64
        $region40: #{tpu_custom_call.1} parent=35 // pred_fallthru
          _
        // Predicated region
        $region41: #{tpu_custom_call.1} parent=35 // pred_check
          %p226 = pneg %p76
        $region42: #{tpu_custom_call.1} parent=35 // pred_check_branch
          %228 = sbr.rel (%p226) target = $region44
        $region43: #{tpu_custom_call.1} parent=35 // pred_region
          %229 = dma.done [#allocation7], 64
        $region44: #{tpu_custom_call.1} parent=35 // pred_fallthru
          _
        // Predicated region
        $region45: #{tpu_custom_call.1} parent=35 // pred_check
          %p230 = pneg %p97
        $region46: #{tpu_custom_call.1} parent=35 // pred_check_branch
          %232 = sbr.rel (%p230) target = $region48
        $region47: #{tpu_custom_call.1} parent=35 // pred_region
          %233 = dma.done [#allocation7], 512
        $region48: #{tpu_custom_call.1} parent=35 // pred_fallthru
          _
        %s234 = sand.u32 %s42, 1
        %s235 = scalar_lea.sflag [#allocation4], %s234
        %s236 = sand.u32 %s42, 1
        %s237 = smul.addr %s236, 4
        %s238 = scalar_lea.vmem [#allocation3], %s237
        %p239 = pneg %p55
        %p240 = pneg %p52
        %p241 = pneg %p76
        %p242 = pneg %p73
        %p243 = pneg %p97
        %p244 = pneg %p94
        %p245 = pneg %p118
        %p246 = pneg %p115
        %p247 = pneg %p144
        %p248 = pneg %p141
        %p249 = scmp.eq.s32.totalorder %s25, 0
        // Predicated region
        $region49: #{tpu_custom_call.1} parent=35 // pred_check
          %p250 = pneg %p249
        $region50: #{tpu_custom_call.1} parent=35 // pred_check_branch
          %252 = sbr.rel (%p250) target = $region52
        $region51: #{tpu_custom_call.1} parent=35 // pred_region
          %253 = vst [vmem:[#allocation2] sm:$0xff] 0.0
        $region52: #{tpu_custom_call.1} parent=35 // pred_fallthru
          _
        %v254 = vld [vmem:[%s221] sm:$0xf]
        %v255 = vunpack.c.l.bf16 %v254
        %v256 = vld [vmem:[#allocation2] sm:$0xff]
        %v257 = vadd.f32 %v256, %v255
        %258 = vst [vmem:[#allocation2] sm:$0xff] %v257
        %p259 = scmp.eq.s32.totalorder %s25, 1
        // Predicated region
        $region53: #{tpu_custom_call.1} parent=35 // pred_check
          %p260 = pneg %p259
        $region54: #{tpu_custom_call.1} parent=35 // pred_check_branch
          %262 = sbr.rel (%p260) target = $region56
        $region55: #{tpu_custom_call.1} parent=35 // pred_region
          %v263 = vld [vmem:[#allocation2] ss:$4 sm:$0x3]
          %vm264 = vcmask 1041408
          %v265 = vsel %vm264, %v263, 0.0
          %266 = vadd.xlane.f32.xlu0 %v265
          %v267 = vpop.xlane.xlu0 %266
          %v268 = vld [vmem:[#allocation6] sm:$0x1]
          %v269 = vlaneseq
          %v270 = vshrl.u32 %v269, 7
          %v271 = vsub.s32 0, %v270
          %v272 = vrot.slane %v268, %v271
          %v273 = vmul.f32 %v267, %v272
          %v274 = vadd.f32 %v273, 0.0
          %s275 = scalar_lea.vmem [#allocation2], 1
          %v276 = vld [vmem:[%s275] ss:$4 sm:$0x3]
          %v277 = vsel %vm264, %v276, 0.0
          %278 = vadd.xlane.f32.xlu0 %v277
          %v279 = vpop.xlane.xlu0 %278
          %v280 = vld [vmem:[#allocation6 + $0x1] sm:$0x1]
          %v281 = vlaneseq
          %v282 = vshrl.u32 %v281, 7
          %v283 = vsub.s32 0, %v282
          %v284 = vrot.slane %v280, %v283
          %v285 = vmul.f32 %v279, %v284
          %v286 = vadd.f32 %v274, %v285
          %s287 = scalar_lea.vmem [#allocation2], 2
          %v288 = vld [vmem:[%s287] ss:$4 sm:$0x3]
          %v289 = vsel %vm264, %v288, 0.0
          %290 = vadd.xlane.f32.xlu0 %v289
          %v291 = vpop.xlane.xlu0 %290
          %v292 = vld [vmem:[#allocation6 + $0x2] sm:$0x1]
          %v293 = vlaneseq
          %v294 = vshrl.u32 %v293, 7
          %v295 = vsub.s32 0, %v294
          %v296 = vrot.slane %v292, %v295
          %v297 = vmul.f32 %v291, %v296
          %v298 = vadd.f32 %v286, %v297
          %s299 = scalar_lea.vmem [#allocation2], 3
          %v300 = vld [vmem:[%s299] ss:$4 sm:$0x3]
          %v301 = vsel %vm264, %v300, 0.0
          %302 = vadd.xlane.f32.xlu0 %v301
          %v303 = vpop.xlane.xlu0 %302
          %v304 = vld [vmem:[#allocation6 + $0x3] sm:$0x1]
          %v305 = vlaneseq
          %v306 = vshrl.u32 %v305, 7
          %v307 = vsub.s32 0, %v306
          %v308 = vrot.slane %v304, %v307
          %v309 = vmul.f32 %v303, %v308
          %v310 = vadd.f32 %v298, %v309
          %v311 = vmax.f32 %v310, 0.0
          %v312 = vld [vmem:[#allocation8] sm:$0xff]
          %v313 = vld [vmem:[#allocation8 + $0x8] sm:$0xff]
          %v314 = vld [vmem:[#allocation8 + $0x10] sm:$0xff]
          %v315 = vld [vmem:[#allocation8 + $0x18] sm:$0xff]
          %v316 = vld [vmem:[%s3] sm:$0x1]
          %v318 = vlaneseq
          %v319 = vshrl.u32 %v318, 7
          %v320 = vsub.s32 0, %v319
          %v321 = vrot.slane %v316, %v320
          %vm323 = vcmask 261120
          %v325 = vsel %vm323, %v311, 0
          %327 = vmatprep.subr.mxu0 0.0
          %328 = vmatpush1.msra.mxu0 %v312
          %329 = vmatprep.subr.mxu0 0.0
          %330 = vmatpush1.msra.mxu0 %v313
          %331 = vmatprep.subr.mxu0 0.0
          %332 = vmatpush1.msra.mxu0 %v314
          %333 = vmatprep.subr.mxu0 0.0
          %334 = vmatpush1.msra.mxu0 %v315
          %335 = vmatprep.subr.mxu0 0.0
          %336 = vmatpush1.msra.mxu0 0.0
          %337 = vmatprep.subr.mxu0 0.0
          %338 = vmatpush1.msra.mxu0 0.0
          %339 = vmatprep.subr.mxu0 0.0
          %340 = vmatpush1.msra.mxu0 0.0
          %341 = vmatprep.subr.mxu0 0.0
          %342 = vmatpush1.msra.mxu0 0.0
          %343 = vmatprep.subr.mxu0 0.0
          %344 = vmatpush1.msra.mxu0 0.0
          %345 = vmatprep.subr.mxu0 0.0
          %346 = vmatpush1.msra.mxu0 0.0
          %347 = vmatprep.subr.mxu0 0.0
          %348 = vmatpush1.msra.mxu0 0.0
          %349 = vmatprep.subr.mxu0 0.0
          %350 = vmatpush1.msra.mxu0 0.0
          %351 = vmatprep.subr.mxu0 0.0
          %352 = vmatpush1.msra.mxu0 0.0
          %353 = vmatprep.subr.mxu0 0.0
          %354 = vmatpush1.msra.mxu0 0.0
          %355 = vmatprep.subr.mxu0 0.0
          %356 = vmatpush1.msra.mxu0 0.0
          %357 = vmatprep.subr.mxu0 0.0
          %358 = vmatpush1.msra.mxu0 0.0
          %359 = vmatprep.subr.mxu0 0.0
          %360 = vmatpush1.msra.mxu0 0.0
          %361 = vmatprep.subr.mxu0 0.0
          %362 = vmatpush1.msra.mxu0 0.0
          %363 = vmatprep.subr.mxu0 0.0
          %364 = vmatpush1.msra.mxu0 0.0
          %365 = vmatprep.subr.mxu0 0.0
          %366 = vmatpush1.msra.mxu0 0.0
          %367 = vmatprep.subr.mxu0 0.0
          %368 = vmatpush1.msra.mxu0 0.0
          %369 = vmatprep.subr.mxu0 0.0
          %370 = vmatpush1.msra.mxu0 0.0
          %371 = vmatprep.subr.mxu0 0.0
          %372 = vmatpush1.msra.mxu0 0.0
          %373 = vmatprep.subr.mxu0 0.0
          %374 = vmatpush1.msra.mxu0 0.0
          %375 = vmatprep.subr.mxu0 0.0
          %376 = vmatpush1.msra.mxu0 0.0
          %377 = vmatprep.subr.mxu0 0.0
          %378 = vmatpush1.msra.mxu0 0.0
          %379 = vmatprep.subr.mxu0 0.0
          %380 = vmatpush1.msra.mxu0 0.0
          %381 = vmatprep.subr.mxu0 0.0
          %382 = vmatpush1.msra.mxu0 0.0
          %383 = vmatprep.subr.mxu0 0.0
          %384 = vmatpush1.msra.mxu0 0.0
          %385 = vmatprep.subr.mxu0 0.0
          %386 = vmatpush1.msra.mxu0 0.0
          %387 = vmatprep.subr.mxu0 0.0
          %388 = vmatpush1.msra.mxu0 0.0
          %389 = vmatprep.subr.mxu0 0.0
          %390 = vmatpush1.msra.mxu0 0.0
          %391 = vmatprep.mubr.f32.mxu0 0.0
          %392 = vmatmul.mubr.f32.gmra.mrb[0].mxu0 %v325
          %v393 = vpop.f32.mrb[0].mxu0
          %v394 = vadd.f32 %v321, %v393
          %v395 = vpop.f32.mrb[0].mxu0
          %396 = vdwg.mxu0
          %397 = vst [vmem:[#allocation9] sm:$0x3] %v394
        $region56: #{tpu_custom_call.1} parent=35 // pred_fallthru
          _
        // Predicated region
        $region57: #{tpu_custom_call.1} parent=35 // pred_check
          %p398 = pneg %p141
        $region58: #{tpu_custom_call.1} parent=35 // pred_check_branch
          %400 = sbr.rel (%p398) target = $region60
        $region59: #{tpu_custom_call.1} parent=35 // pred_region
          %s402 = ssub.s32 32, 32
          %403 = vsyncadd [#allocation5], %s402
          %s404 = smul.addr %s24, 32
          %s405 = scalar_lea.hbm %s4, %s404
          %s407 = sshll.u32 [#allocation9], 4
          %s408 = int_to_ptr.vmem [resolvable:$true] %s407
          %410 = dma.vmem_to_hbm [thread:$0]  %s408, 32, %s405, [#allocation5]
        $region60: #{tpu_custom_call.1} parent=35 // pred_fallthru
          _
        // Predicated region
        $region61: #{tpu_custom_call.1} parent=35 // pred_check
          %p411 = pneg %p141
        $region62: #{tpu_custom_call.1} parent=35 // pred_check_branch
          %413 = sbr.rel (%p411) target = $region64
        $region63: #{tpu_custom_call.1} parent=35 // pred_region
          %414 = dma.done [#allocation5], 32
        $region64: #{tpu_custom_call.1} parent=35 // pred_fallthru
          _
      $region36: #{tpu_custom_call.1} parent=5 // pred_fallthru
        _
      %p415 = scmp.le.s32.totalorder 2, %s15
      // Predicated region
      $region65: #{tpu_custom_call.1} parent=5 // pred_check
        %p416 = pneg %p415
      $region66: #{tpu_custom_call.1} parent=5 // pred_check_branch
        %418 = sbr.rel (%p416) target = $region68
      $region67: #{tpu_custom_call.1} parent=5 // pred_region
        %s419 = ssub.s32 %s15, 2
      $region68: #{tpu_custom_call.1} parent=5 // pred_fallthru
        _
    $region6: #{tpu_custom_call.1} parent=1 // loop_footer
      %s19 = sadd.s32 1, %s15
    $region7: #{tpu_custom_call.1} parent=1 // loop_footer_branch
      %14 = sbr.rel target = $region3
    $region8: #{tpu_custom_call.1} parent=1 // loop_exit
      _
    %420 = vsyncpa [#allocation4], 1
    %s421 = scalar_lea.sflag [#allocation4], 1
    %422 = vsyncpa %s421, 1
    %423 = vsyncpa [#allocation7], 1
    %424 = vsyncpa [#allocation5], 1
    %s425 = scalar_lea.sflag [#allocation5], 1
    %426 = vsyncpa %s425, 1

</llo_original>
